<compile_context>
chip_gen: v7x
topology: tpu7x:2x2x1
jax: 0.10.0
libtpu: 0.0.40
codegen_flags: <defaults>
</compile_context>

<pallas_src>
import functools

import jax
import jax.numpy as jnp
from jax.experimental import pallas as pl
from jax.experimental.pallas import tpu as pltpu

LANE = 128
SUBLANE = 8


def _round_up(v: int, m: int) -> int:
    return ((v + m - 1) // m) * m


def _tpu_kind() -> str:
    try:
        return jax.devices()[0].device_kind.lower()
    except Exception:
        return ""


def _mlp_kernel(*refs, num_layers: int):
    """Fused MLP on one row tile.

    refs = (x_ref, w_0, b_0, ..., w_{L-1}, b_{L-1}, o_ref)
      x_ref : (tile_m, in_dim_0)
      w_i   : (in_dim_i, out_dim_i)   (stored transposed: y @ W)
      b_i   : (1, out_dim_i)
      o_ref : (tile_m, out_dim_{L-1})
    """
    x_ref = refs[0]
    o_ref = refs[-1]
    wb = refs[1:-1]

    y = x_ref[...]
    for i in range(num_layers):
        w_ref = wb[2 * i]
        b_ref = wb[2 * i + 1]
        # Cast the streaming operand to the weights' dtype (no-op for f32,
        # bf16 MXU rate when io_dtype=bf16); accumulate in f32 on the MXU.
        y = jnp.dot(y.astype(w_ref.dtype), w_ref[...],
                    preferred_element_type=jnp.float32)
        y = y + b_ref[...].astype(jnp.float32)   # (1, N) broadcasts over rows
        if i < num_layers - 1:
            y = jnp.maximum(y, 0.0)              # ReLU on the f32 accumulator
    o_ref[...] = y.astype(o_ref.dtype)


def mlp_forward(x, params, *, io_dtype=None, tile_m_max=None,
                vmem_budget_bytes=24 * 1024 * 1024):
    """x: (..., input_dim). params: list of (W (in, out), b (out,)). Fused MLP."""
    lead_shape = x.shape[:-1]
    K = x.shape[-1]
    num_layers = len(params)
    in_dims = [w.shape[0] for w, _ in params]
    out_dims = [w.shape[1] for w, _ in params]
    assert in_dims[0] == K, "first layer in_features must match x's last dim"
    out_dim = out_dims[-1]

    x2d = x.reshape(-1, K)
    M = x2d.shape[0]

    kind = _tpu_kind()
    is_v7 = "v7" in kind
    if tile_m_max is None:
        # Per-generation knob: v5e is the most mem-bound, keep tiles a bit
        # smaller; v6e/v7x amortize the ~0.35us per-step overhead with 4096.
        tile_m_max = 2048 if "v5" in kind else 4096

    # Cap tile_m by a VMEM budget that fits v7x's 32 MiB default scoped VMEM.
    # Narrow arrays still occupy full (8,128) tiles in VMEM, so round widths
    # up to 128 lanes. x / out tiles are double-buffered by the pipeliner.
    widest = max([K] + out_dims)
    row_bytes = 4 * (2 * _round_up(K, LANE)
                     + 2 * _round_up(out_dim, LANE)
                     + 2 * _round_up(widest, LANE))
    tile_cap = max(SUBLANE, (vmem_budget_bytes // row_bytes) // SUBLANE * SUBLANE)
    tile_m_max = max(SUBLANE, min(tile_m_max, tile_cap))

    # Balanced row tiling: avoids the previous up-to-2x M-padding waste.
    n_tiles = pl.cdiv(M, tile_m_max)
    if is_v7:
        # Give both v7x TensorCores work and keep the step count even.
        n_tiles = max(n_tiles, min(2, pl.cdiv(M, SUBLANE)))
        if n_tiles > 1 and n_tiles % 2:
            n_tiles += 1
    tile_m = _round_up(pl.cdiv(M, n_tiles), SUBLANE)
    M_pad = n_tiles * tile_m

    if M_pad != M:
        # At most a handful of rows; padded rows are computed and sliced off.
        x2d = jnp.pad(x2d, ((0, M_pad - M), (0, 0)))
    if io_dtype is not None:
        x2d = x2d.astype(io_dtype)

    flat_params = []
    # x block: last dim equals the full array dim (K), so no (8,128) issue and
    # no HBM-side feature padding of the dominant activation stream.
    in_specs = [pl.BlockSpec((tile_m, K), lambda i: (i, 0))]
    for w, b in params:
        w_ = w if io_dtype is None else w.astype(io_dtype)
        b2 = b.reshape(1, -1)
        flat_params += [w_, b2]
        # Full-array blocks with constant index_map: resident across the grid,
        # no re-DMA per step.
        in_specs.append(pl.BlockSpec(w_.shape, lambda i: (0, 0)))
        in_specs.append(pl.BlockSpec(b2.shape, lambda i: (0, 0)))

    out = pl.pallas_call(
        functools.partial(_mlp_kernel, num_layers=num_layers),
        out_shape=jax.ShapeDtypeStruct((M_pad, out_dim), x.dtype),
        grid=(n_tiles,),
        in_specs=in_specs,
        # True output width: masked stores, but 32x less HBM write traffic for
        # a 4-wide output and no post-kernel feature slice.
        out_specs=pl.BlockSpec((tile_m, out_dim), lambda i: (i, 0)),
        compiler_params=pltpu.CompilerParams(
            dimension_semantics=("parallel",)),
    )(x2d, *flat_params)

    if M_pad != M:
        out = out[:M]
    return out.reshape(*lead_shape, out_dim)


def init_mlp_params(key, input_dim, hidden_dim, output_dim, num_layers):
    """Deterministic synthetic init matching nn.Linear shapes (stored as W^T)."""
    h = [hidden_dim] * (num_layers - 1)
    dims_in = [input_dim] + h
    dims_out = h + [output_dim]
    params = []
    for n_in, n_out in zip(dims_in, dims_out):
        key, kw, kb = jax.random.split(key, 3)
        bound = 1.0 / jnp.sqrt(jnp.float32(n_in))
        w = jax.random.uniform(kw, (n_in, n_out), jnp.float32, -bound, bound)
        b = jax.random.uniform(kb, (n_out,), jnp.float32, -bound, bound)
        params.append((w, b))
    return params


def mlp_reference(x, params):
    """Pure-JAX reference for correctness check."""
    y = x
    num_layers = len(params)
    for i, (w, b) in enumerate(params):
        y = y @ w + b
        if i < num_layers - 1:
            y = jnp.maximum(y, 0.0)
    return y


if __name__ == "__main__":
    # Small shapes consistent with the module: x of shape (seq, batch, input_dim),
    # as used for query embeddings in mask2former.
    seq, batch = 8, 2
    input_dim, hidden_dim, output_dim, num_layers = 4, 32, 4, 3

    key = jax.random.PRNGKey(0)
    key, kx = jax.random.split(key)
    x = jax.random.normal(kx, (seq, batch, input_dim), jnp.float32)

    params = init_mlp_params(key, input_dim, hidden_dim, output_dim, num_layers)

    out = mlp_forward(x, params)
    out = jax.block_until_ready(out)

    ref = mlp_reference(x, params)
    assert out.shape == (seq, batch, output_dim)
    assert jnp.allclose(out, ref, atol=1e-5, rtol=1e-5)

    print("KERNEL_OK")
</pallas_src>

<mosaic_0001>
module attributes {stable_mosaic.version = 11 : i64} {
  func.func @_mlp_kernel(%arg0: i32, %arg1: memref<16x4xf32, #tpu.memory_space<vmem>>, %arg2: memref<4x32xf32, #tpu.memory_space<vmem>>, %arg3: memref<1x32xf32, #tpu.memory_space<vmem>>, %arg4: memref<32x32xf32, #tpu.memory_space<vmem>>, %arg5: memref<1x32xf32, #tpu.memory_space<vmem>>, %arg6: memref<32x4xf32, #tpu.memory_space<vmem>>, %arg7: memref<1x4xf32, #tpu.memory_space<vmem>>, %arg8: memref<16x4xf32, #tpu.memory_space<vmem>>) attributes {dimension_semantics = [#tpu.dimension_semantics<parallel>], iteration_bounds = array<i64: 1>, scalar_prefetch = 0 : i64, scratch_operands = 0 : i64, tpu.core_type = #tpu.core_type<tc>, window_params = [{transform_indices = @transform_0, window_bounds = array<i64: 16, 4>}, {pipeline_mode = #tpu.pipeline_mode<synchronous>, transform_indices = @transform_1, window_bounds = array<i64: 4, 32>}, {pipeline_mode = #tpu.pipeline_mode<synchronous>, transform_indices = @transform_2, window_bounds = array<i64: 1, 32>}, {pipeline_mode = #tpu.pipeline_mode<synchronous>, transform_indices = @transform_3, window_bounds = array<i64: 32, 32>}, {pipeline_mode = #tpu.pipeline_mode<synchronous>, transform_indices = @transform_4, window_bounds = array<i64: 1, 32>}, {pipeline_mode = #tpu.pipeline_mode<synchronous>, transform_indices = @transform_5, window_bounds = array<i64: 32, 4>}, {pipeline_mode = #tpu.pipeline_mode<synchronous>, transform_indices = @transform_6, window_bounds = array<i64: 1, 4>}, {transform_indices = @transform_7, window_bounds = array<i64: 16, 4>}]} {
    %c0 = arith.constant 0 : index
    %c0_0 = arith.constant 0 : index
    %0 = vector.load %arg1[%c0, %c0_0] : memref<16x4xf32, #tpu.memory_space<vmem>>, vector<16x4xf32>
    %c0_1 = arith.constant 0 : index
    %c0_2 = arith.constant 0 : index
    %1 = vector.load %arg2[%c0_1, %c0_2] : memref<4x32xf32, #tpu.memory_space<vmem>>, vector<4x32xf32>
    %cst = arith.constant dense<0.000000e+00> : vector<16x32xf32>
    %2 = tpu.matmul %0, %1, %cst {dimension_numbers = #tpu.dot_dimension_numbers<[1], [0], [0], [1], [0, 0, 1, 1], [], []>} : vector<16x4xf32>, vector<4x32xf32>, vector<16x32xf32> -> vector<16x32xf32>
    %c0_3 = arith.constant 0 : index
    %c0_4 = arith.constant 0 : index
    %3 = vector.load %arg3[%c0_3, %c0_4] : memref<1x32xf32, #tpu.memory_space<vmem>>, vector<1x32xf32>
    %4 = vector.broadcast %3 : vector<1x32xf32> to vector<16x32xf32>
    %5 = arith.addf %2, %4 : vector<16x32xf32>
    %cst_5 = arith.constant 0.000000e+00 : f32
    %6 = vector.broadcast %cst_5 : f32 to vector<16x32xf32>
    %7 = arith.maximumf %5, %6 : vector<16x32xf32>
    %c0_6 = arith.constant 0 : index
    %c0_7 = arith.constant 0 : index
    %8 = vector.load %arg4[%c0_6, %c0_7] : memref<32x32xf32, #tpu.memory_space<vmem>>, vector<32x32xf32>
    %cst_8 = arith.constant dense<0.000000e+00> : vector<16x32xf32>
    %9 = tpu.matmul %7, %8, %cst_8 {dimension_numbers = #tpu.dot_dimension_numbers<[1], [0], [0], [1], [0, 0, 1, 1], [], []>} : vector<16x32xf32>, vector<32x32xf32>, vector<16x32xf32> -> vector<16x32xf32>
    %c0_9 = arith.constant 0 : index
    %c0_10 = arith.constant 0 : index
    %10 = vector.load %arg5[%c0_9, %c0_10] : memref<1x32xf32, #tpu.memory_space<vmem>>, vector<1x32xf32>
    %11 = vector.broadcast %10 : vector<1x32xf32> to vector<16x32xf32>
    %12 = arith.addf %9, %11 : vector<16x32xf32>
    %cst_11 = arith.constant 0.000000e+00 : f32
    %13 = vector.broadcast %cst_11 : f32 to vector<16x32xf32>
    %14 = arith.maximumf %12, %13 : vector<16x32xf32>
    %c0_12 = arith.constant 0 : index
    %c0_13 = arith.constant 0 : index
    %15 = vector.load %arg6[%c0_12, %c0_13] : memref<32x4xf32, #tpu.memory_space<vmem>>, vector<32x4xf32>
    %cst_14 = arith.constant dense<0.000000e+00> : vector<16x4xf32>
    %16 = tpu.matmul %14, %15, %cst_14 {dimension_numbers = #tpu.dot_dimension_numbers<[1], [0], [0], [1], [0, 0, 1, 1], [], []>} : vector<16x32xf32>, vector<32x4xf32>, vector<16x4xf32> -> vector<16x4xf32>
    %c0_15 = arith.constant 0 : index
    %c0_16 = arith.constant 0 : index
    %17 = vector.load %arg7[%c0_15, %c0_16] : memref<1x4xf32, #tpu.memory_space<vmem>>, vector<1x4xf32>
    %18 = vector.broadcast %17 : vector<1x4xf32> to vector<16x4xf32>
    %19 = arith.addf %16, %18 : vector<16x4xf32>
    %c0_17 = arith.constant 0 : index
    %c0_18 = arith.constant 0 : index
    %20 = vector.load %arg8[%c0_17, %c0_18] : memref<16x4xf32, #tpu.memory_space<vmem>>, vector<16x4xf32>
    tpu.vector_store %arg8[%c0_17, %c0_18], %19 {strides = array<i32>} : memref<16x4xf32, #tpu.memory_space<vmem>>, vector<16x4xf32>,
    return
  }
  func.func @transform_0(%arg0: i32) -> (i32, i32) {
    %c0_i32 = arith.constant 0 : i32
    %c0_i32_0 = arith.constant 0 : i32
    return %arg0, %c0_i32 : i32, i32
  }
  func.func @transform_1(%arg0: i32) -> (i32, i32) {
    %c0_i32 = arith.constant 0 : i32
    %c0_i32_0 = arith.constant 0 : i32
    %c0_i32_1 = arith.constant 0 : i32
    return %c0_i32, %c0_i32_0 : i32, i32
  }
  func.func @transform_2(%arg0: i32) -> (i32, i32) {
    %c0_i32 = arith.constant 0 : i32
    %c0_i32_0 = arith.constant 0 : i32
    %c0_i32_1 = arith.constant 0 : i32
    return %c0_i32, %c0_i32_0 : i32, i32
  }
  func.func @transform_3(%arg0: i32) -> (i32, i32) {
    %c0_i32 = arith.constant 0 : i32
    %c0_i32_0 = arith.constant 0 : i32
    %c0_i32_1 = arith.constant 0 : i32
    return %c0_i32, %c0_i32_0 : i32, i32
  }
  func.func @transform_4(%arg0: i32) -> (i32, i32) {
    %c0_i32 = arith.constant 0 : i32
    %c0_i32_0 = arith.constant 0 : i32
    %c0_i32_1 = arith.constant 0 : i32
    return %c0_i32, %c0_i32_0 : i32, i32
  }
  func.func @transform_5(%arg0: i32) -> (i32, i32) {
    %c0_i32 = arith.constant 0 : i32
    %c0_i32_0 = arith.constant 0 : i32
    %c0_i32_1 = arith.constant 0 : i32
    return %c0_i32, %c0_i32_0 : i32, i32
  }
  func.func @transform_6(%arg0: i32) -> (i32, i32) {
    %c0_i32 = arith.constant 0 : i32
    %c0_i32_0 = arith.constant 0 : i32
    %c0_i32_1 = arith.constant 0 : i32
    return %c0_i32, %c0_i32_0 : i32, i32
  }
  func.func @transform_7(%arg0: i32) -> (i32, i32) {
    %c0_i32 = arith.constant 0 : i32
    %c0_i32_0 = arith.constant 0 : i32
    return %arg0, %c0_i32 : i32, i32
  }
}

</mosaic_0001>

<llo_original>
// kernel: tpu_custom_call.1
$region0: #{tpu_custom_call.1}
  #allocation0 [shape = 'u32[]', space=smem, size = 0x4, offset = 0x4, fixed_abs, tag = 'smem constant byte address 0x4 - core index']
  #allocation1 [shape = 'u32[144,128]{1,0:T(1,128)}', space=vmem, size = 0x12000, scoped, tag = 'internal scratch']
  %s0 = inlined_call_operand.vmem [shape: f32[16,4], index: 0, kind: input, shape index: {}]
  %s1 = inlined_call_operand.vmem [shape: f32[4,32], index: 1, kind: input, shape index: {}]
  %s2 = inlined_call_operand.vmem [shape: f32[1,32], index: 2, kind: input, shape index: {}]
  %s3 = inlined_call_operand.vmem [shape: f32[32,32], index: 3, kind: input, shape index: {}]
  %s4 = inlined_call_operand.vmem [shape: f32[1,32], index: 4, kind: input, shape index: {}]
  %s5 = inlined_call_operand.vmem [shape: f32[32,4], index: 5, kind: input, shape index: {}]
  %s6 = inlined_call_operand.vmem [shape: f32[1,4], index: 6, kind: input, shape index: {}]
  %s7 = inlined_call_operand.vmem [shape: f32[16,4], index: 7, kind: output, shape index: {}]
  %s8 = sld [smem:[#allocation0]]
  $region38: #{tpu_custom_call.1} parent=0
    _
  %s10 = ssub.s32 1, %s8
  %s11 = scalar_select 0, %s10, %s8
  // Predicated region
  $region2: #{tpu_custom_call.1} parent=0 // pred_check
    _
  $region3: #{tpu_custom_call.1} parent=0 // pred_check_branch
    %13 = sbr.rel (0) target = $region5
  $region4: #{tpu_custom_call.1} parent=0 // pred_region
    _
  $region5: #{tpu_custom_call.1} parent=0 // pred_fallthru
    _
  // Predicated region
  $region6: #{tpu_custom_call.1} parent=0 // pred_check
    _
  $region7: #{tpu_custom_call.1} parent=0 // pred_check_branch
    %15 = sbr.rel (0) target = $region9
  $region8: #{tpu_custom_call.1} parent=0 // pred_region
    _
  $region9: #{tpu_custom_call.1} parent=0 // pred_fallthru
    _
  // Predicated region
  $region10: #{tpu_custom_call.1} parent=0 // pred_check
    _
  $region11: #{tpu_custom_call.1} parent=0 // pred_check_branch
    %17 = sbr.rel (0) target = $region13
  $region12: #{tpu_custom_call.1} parent=0 // pred_region
    _
  $region13: #{tpu_custom_call.1} parent=0 // pred_fallthru
    _
  // Predicated region
  $region14: #{tpu_custom_call.1} parent=0 // pred_check
    _
  $region15: #{tpu_custom_call.1} parent=0 // pred_check_branch
    %19 = sbr.rel (0) target = $region17
  $region16: #{tpu_custom_call.1} parent=0 // pred_region
    _
  $region17: #{tpu_custom_call.1} parent=0 // pred_fallthru
    _
  // Predicated region
  $region18: #{tpu_custom_call.1} parent=0 // pred_check
    _
  $region19: #{tpu_custom_call.1} parent=0 // pred_check_branch
    %21 = sbr.rel (0) target = $region21
  $region20: #{tpu_custom_call.1} parent=0 // pred_region
    _
  $region21: #{tpu_custom_call.1} parent=0 // pred_fallthru
    _
  // Predicated region
  $region22: #{tpu_custom_call.1} parent=0 // pred_check
    _
  $region23: #{tpu_custom_call.1} parent=0 // pred_check_branch
    %23 = sbr.rel (0) target = $region25
  $region24: #{tpu_custom_call.1} parent=0 // pred_region
    _
  $region25: #{tpu_custom_call.1} parent=0 // pred_fallthru
    _
  // Predicated region
  $region26: #{tpu_custom_call.1} parent=0 // pred_check
    _
  $region27: #{tpu_custom_call.1} parent=0 // pred_check_branch
    %25 = sbr.rel (0) target = $region29
  $region28: #{tpu_custom_call.1} parent=0 // pred_region
    _
  $region29: #{tpu_custom_call.1} parent=0 // pred_fallthru
    _
  %v26 = vld [vmem:[%s0] sm:$0xff]
  %v27 = vld [vmem:[%s0 + $0x8] sm:$0xff]
  %v28 = vld [vmem:[%s1] sm:$0xf]
  %v29 = vld [vmem:[%s2] sm:$0x1]
  %v31 = vlaneseq
  %v32 = vshrl.u32 %v31, 7
  %v33 = vsub.s32 0, %v32
  %v34 = vrot.slane %v29, %v33
  %vm36 = vcmask 31744
  %v38 = vsel %vm36, %v26, 0
  %v41 = vsel %vm36, %v27, 0
  %vm43 = vcmask 1043456
  %v45 = vsel %vm43, %v28, 0
  %47 = vmatprep.subr.mxu0 0.0
  %48 = vmatpush1.msra.mxu0 %v45
  %49 = vmatprep.subr.mxu0 0.0
  %50 = vmatpush1.msra.mxu0 0.0
  %51 = vmatprep.subr.mxu0 0.0
  %52 = vmatpush1.msra.mxu0 0.0
  %53 = vmatprep.subr.mxu0 0.0
  %54 = vmatpush1.msra.mxu0 0.0
  %55 = vmatprep.subr.mxu0 0.0
  %56 = vmatpush1.msra.mxu0 0.0
  %57 = vmatprep.subr.mxu0 0.0
  %58 = vmatpush1.msra.mxu0 0.0
  %59 = vmatprep.subr.mxu0 0.0
  %60 = vmatpush1.msra.mxu0 0.0
  %61 = vmatprep.subr.mxu0 0.0
  %62 = vmatpush1.msra.mxu0 0.0
  %63 = vmatprep.subr.mxu0 0.0
  %64 = vmatpush1.msra.mxu0 0.0
  %65 = vmatprep.subr.mxu0 0.0
  %66 = vmatpush1.msra.mxu0 0.0
  %67 = vmatprep.subr.mxu0 0.0
  %68 = vmatpush1.msra.mxu0 0.0
  %69 = vmatprep.subr.mxu0 0.0
  %70 = vmatpush1.msra.mxu0 0.0
  %71 = vmatprep.subr.mxu0 0.0
  %72 = vmatpush1.msra.mxu0 0.0
  %73 = vmatprep.subr.mxu0 0.0
  %74 = vmatpush1.msra.mxu0 0.0
  %75 = vmatprep.subr.mxu0 0.0
  %76 = vmatpush1.msra.mxu0 0.0
  %77 = vmatprep.subr.mxu0 0.0
  %78 = vmatpush1.msra.mxu0 0.0
  %79 = vmatprep.subr.mxu0 0.0
  %80 = vmatpush1.msra.mxu0 0.0
  %81 = vmatprep.subr.mxu0 0.0
  %82 = vmatpush1.msra.mxu0 0.0
  %83 = vmatprep.subr.mxu0 0.0
  %84 = vmatpush1.msra.mxu0 0.0
  %85 = vmatprep.subr.mxu0 0.0
  %86 = vmatpush1.msra.mxu0 0.0
  %87 = vmatprep.subr.mxu0 0.0
  %88 = vmatpush1.msra.mxu0 0.0
  %89 = vmatprep.subr.mxu0 0.0
  %90 = vmatpush1.msra.mxu0 0.0
  %91 = vmatprep.subr.mxu0 0.0
  %92 = vmatpush1.msra.mxu0 0.0
  %93 = vmatprep.subr.mxu0 0.0
  %94 = vmatpush1.msra.mxu0 0.0
  %95 = vmatprep.subr.mxu0 0.0
  %96 = vmatpush1.msra.mxu0 0.0
  %97 = vmatprep.subr.mxu0 0.0
  %98 = vmatpush1.msra.mxu0 0.0
  %99 = vmatprep.subr.mxu0 0.0
  %100 = vmatpush1.msra.mxu0 0.0
  %101 = vmatprep.subr.mxu0 0.0
  %102 = vmatpush1.msra.mxu0 0.0
  %103 = vmatprep.subr.mxu0 0.0
  %104 = vmatpush1.msra.mxu0 0.0
  %105 = vmatprep.subr.mxu0 0.0
  %106 = vmatpush1.msra.mxu0 0.0
  %107 = vmatprep.subr.mxu0 0.0
  %108 = vmatpush1.msra.mxu0 0.0
  %109 = vmatprep.subr.mxu0 0.0
  %110 = vmatpush1.msra.mxu0 0.0
  %111 = vmatprep.mubr.f32.mxu0 0.0
  %112 = vmatmul.mubr.f32.gmra.mrb[0].mxu0 %v38
  %v113 = vpop.f32.mrb[0].mxu0
  %v114 = vadd.f32 %v34, %v113
  %v115 = vpop.f32.mrb[0].mxu0
  %116 = vmatprep.mubr.f32.mxu0 0.0
  %117 = vmatmul.mubr.f32.gmra.mrb[0].mxu0 %v41
  %v118 = vpop.f32.mrb[0].mxu0
  %v119 = vadd.f32 %v34, %v118
  %v120 = vpop.f32.mrb[0].mxu0
  %121 = vdwg.mxu0
  %v122 = vmax.f32 %v114, 0.0
  %v123 = vmax.f32 %v119, 0.0
  %v124 = vld [vmem:[%s3] sm:$0xff]
  %v125 = vld [vmem:[%s3 + $0x8] sm:$0xff]
  %v126 = vld [vmem:[%s3 + $0x10] sm:$0xff]
  %v127 = vld [vmem:[%s3 + $0x18] sm:$0xff]
  %v128 = vld [vmem:[%s4] sm:$0x1]
  %v130 = vlaneseq
  %v131 = vshrl.u32 %v130, 7
  %v132 = vsub.s32 0, %v131
  %v133 = vrot.slane %v128, %v132
  %vm135 = vcmask 261120
  %v137 = vsel %vm135, %v122, 0
  %v140 = vsel %vm135, %v123, 0
  %142 = vmatprep.subr.mxu0 0.0
  %143 = vmatpush1.msra.mxu0 %v124
  %144 = vmatprep.subr.mxu0 0.0
  %145 = vmatpush1.msra.mxu0 %v125
  %146 = vmatprep.subr.mxu0 0.0
  %147 = vmatpush1.msra.mxu0 %v126
  %148 = vmatprep.subr.mxu0 0.0
  %149 = vmatpush1.msra.mxu0 %v127
  %150 = vmatprep.subr.mxu0 0.0
  %151 = vmatpush1.msra.mxu0 0.0
  %152 = vmatprep.subr.mxu0 0.0
  %153 = vmatpush1.msra.mxu0 0.0
  %154 = vmatprep.subr.mxu0 0.0
  %155 = vmatpush1.msra.mxu0 0.0
  %156 = vmatprep.subr.mxu0 0.0
  %157 = vmatpush1.msra.mxu0 0.0
  %158 = vmatprep.subr.mxu0 0.0
  %159 = vmatpush1.msra.mxu0 0.0
  %160 = vmatprep.subr.mxu0 0.0
  %161 = vmatpush1.msra.mxu0 0.0
  %162 = vmatprep.subr.mxu0 0.0
  %163 = vmatpush1.msra.mxu0 0.0
  %164 = vmatprep.subr.mxu0 0.0
  %165 = vmatpush1.msra.mxu0 0.0
  %166 = vmatprep.subr.mxu0 0.0
  %167 = vmatpush1.msra.mxu0 0.0
  %168 = vmatprep.subr.mxu0 0.0
  %169 = vmatpush1.msra.mxu0 0.0
  %170 = vmatprep.subr.mxu0 0.0
  %171 = vmatpush1.msra.mxu0 0.0
  %172 = vmatprep.subr.mxu0 0.0
  %173 = vmatpush1.msra.mxu0 0.0
  %174 = vmatprep.subr.mxu0 0.0
  %175 = vmatpush1.msra.mxu0 0.0
  %176 = vmatprep.subr.mxu0 0.0
  %177 = vmatpush1.msra.mxu0 0.0
  %178 = vmatprep.subr.mxu0 0.0
  %179 = vmatpush1.msra.mxu0 0.0
  %180 = vmatprep.subr.mxu0 0.0
  %181 = vmatpush1.msra.mxu0 0.0
  %182 = vmatprep.subr.mxu0 0.0
  %183 = vmatpush1.msra.mxu0 0.0
  %184 = vmatprep.subr.mxu0 0.0
  %185 = vmatpush1.msra.mxu0 0.0
  %186 = vmatprep.subr.mxu0 0.0
  %187 = vmatpush1.msra.mxu0 0.0
  %188 = vmatprep.subr.mxu0 0.0
  %189 = vmatpush1.msra.mxu0 0.0
  %190 = vmatprep.subr.mxu0 0.0
  %191 = vmatpush1.msra.mxu0 0.0
  %192 = vmatprep.subr.mxu0 0.0
  %193 = vmatpush1.msra.mxu0 0.0
  %194 = vmatprep.subr.mxu0 0.0
  %195 = vmatpush1.msra.mxu0 0.0
  %196 = vmatprep.subr.mxu0 0.0
  %197 = vmatpush1.msra.mxu0 0.0
  %198 = vmatprep.subr.mxu0 0.0
  %199 = vmatpush1.msra.mxu0 0.0
  %200 = vmatprep.subr.mxu0 0.0
  %201 = vmatpush1.msra.mxu0 0.0
  %202 = vmatprep.subr.mxu0 0.0
  %203 = vmatpush1.msra.mxu0 0.0
  %204 = vmatprep.subr.mxu0 0.0
  %205 = vmatpush1.msra.mxu0 0.0
  %206 = vmatprep.mubr.f32.mxu0 0.0
  %207 = vmatmul.mubr.f32.gmra.mrb[0].mxu0 %v137
  %v208 = vpop.f32.mrb[0].mxu0
  %v209 = vadd.f32 %v133, %v208
  %v210 = vpop.f32.mrb[0].mxu0
  %211 = vmatprep.mubr.f32.mxu0 0.0
  %212 = vmatmul.mubr.f32.gmra.mrb[0].mxu0 %v140
  %v213 = vpop.f32.mrb[0].mxu0
  %v214 = vadd.f32 %v133, %v213
  %v215 = vpop.f32.mrb[0].mxu0
  %216 = vdwg.mxu0
  %v217 = vmax.f32 %v209, 0.0
  %v218 = vmax.f32 %v214, 0.0
  %v219 = vld [vmem:[%s5] sm:$0xff]
  %v220 = vld [vmem:[%s5 + $0x8] sm:$0xff]
  %v221 = vld [vmem:[%s5 + $0x10] sm:$0xff]
  %v222 = vld [vmem:[%s5 + $0x18] sm:$0xff]
  %v223 = vld [vmem:[%s6] sm:$0x1]
  %v225 = vlaneseq
  %v226 = vshrl.u32 %v225, 7
  %v227 = vsub.s32 0, %v226
  %v228 = vrot.slane %v223, %v227
  %v231 = vsel %vm135, %v217, 0
  %v234 = vsel %vm135, %v218, 0
  %236 = vmatprep.subr.mxu0 0.0
  %237 = vmatpush1.msra.mxu0 %v219
  %238 = vmatprep.subr.mxu0 0.0
  %239 = vmatpush1.msra.mxu0 %v220
  %240 = vmatprep.subr.mxu0 0.0
  %241 = vmatpush1.msra.mxu0 %v221
  %242 = vmatprep.subr.mxu0 0.0
  %243 = vmatpush1.msra.mxu0 %v222
  %244 = vmatprep.subr.mxu0 0.0
  %245 = vmatpush1.msra.mxu0 0.0
  %246 = vmatprep.subr.mxu0 0.0
  %247 = vmatpush1.msra.mxu0 0.0
  %248 = vmatprep.subr.mxu0 0.0
  %249 = vmatpush1.msra.mxu0 0.0
  %250 = vmatprep.subr.mxu0 0.0
  %251 = vmatpush1.msra.mxu0 0.0
  %252 = vmatprep.subr.mxu0 0.0
  %253 = vmatpush1.msra.mxu0 0.0
  %254 = vmatprep.subr.mxu0 0.0
  %255 = vmatpush1.msra.mxu0 0.0
  %256 = vmatprep.subr.mxu0 0.0
  %257 = vmatpush1.msra.mxu0 0.0
  %258 = vmatprep.subr.mxu0 0.0
  %259 = vmatpush1.msra.mxu0 0.0
  %260 = vmatprep.subr.mxu0 0.0
  %261 = vmatpush1.msra.mxu0 0.0
  %262 = vmatprep.subr.mxu0 0.0
  %263 = vmatpush1.msra.mxu0 0.0
  %264 = vmatprep.subr.mxu0 0.0
  %265 = vmatpush1.msra.mxu0 0.0
  %266 = vmatprep.subr.mxu0 0.0
  %267 = vmatpush1.msra.mxu0 0.0
  %268 = vmatprep.subr.mxu0 0.0
  %269 = vmatpush1.msra.mxu0 0.0
  %270 = vmatprep.subr.mxu0 0.0
  %271 = vmatpush1.msra.mxu0 0.0
  %272 = vmatprep.subr.mxu0 0.0
  %273 = vmatpush1.msra.mxu0 0.0
  %274 = vmatprep.subr.mxu0 0.0
  %275 = vmatpush1.msra.mxu0 0.0
  %276 = vmatprep.subr.mxu0 0.0
  %277 = vmatpush1.msra.mxu0 0.0
  %278 = vmatprep.subr.mxu0 0.0
  %279 = vmatpush1.msra.mxu0 0.0
  %280 = vmatprep.subr.mxu0 0.0
  %281 = vmatpush1.msra.mxu0 0.0
  %282 = vmatprep.subr.mxu0 0.0
  %283 = vmatpush1.msra.mxu0 0.0
  %284 = vmatprep.subr.mxu0 0.0
  %285 = vmatpush1.msra.mxu0 0.0
  %286 = vmatprep.subr.mxu0 0.0
  %287 = vmatpush1.msra.mxu0 0.0
  %288 = vmatprep.subr.mxu0 0.0
  %289 = vmatpush1.msra.mxu0 0.0
  %290 = vmatprep.subr.mxu0 0.0
  %291 = vmatpush1.msra.mxu0 0.0
  %292 = vmatprep.subr.mxu0 0.0
  %293 = vmatpush1.msra.mxu0 0.0
  %294 = vmatprep.subr.mxu0 0.0
  %295 = vmatpush1.msra.mxu0 0.0
  %296 = vmatprep.subr.mxu0 0.0
  %297 = vmatpush1.msra.mxu0 0.0
  %298 = vmatprep.subr.mxu0 0.0
  %299 = vmatpush1.msra.mxu0 0.0
  %300 = vmatprep.mubr.f32.mxu0 0.0
  %301 = vmatmul.mubr.f32.gmra.mrb[0].mxu0 %v231
  %v302 = vpop.f32.mrb[0].mxu0
  %v303 = vadd.f32 %v228, %v302
  %v304 = vpop.f32.mrb[0].mxu0
  %305 = vmatprep.mubr.f32.mxu0 0.0
  %306 = vmatmul.mubr.f32.gmra.mrb[0].mxu0 %v234
  %v307 = vpop.f32.mrb[0].mxu0
  %v308 = vadd.f32 %v228, %v307
  %v309 = vpop.f32.mrb[0].mxu0
  %310 = vdwg.mxu0
  %311 = vst.msk [vmem:[%s7] sm:$0xff] %vm36, %v303
  %312 = vst.msk [vmem:[%s7 + $0x8] sm:$0xff] %vm36, %v308
  // Predicated region
  $region30: #{tpu_custom_call.1} parent=0 // pred_check
    _
  $region31: #{tpu_custom_call.1} parent=0 // pred_check_branch
    %314 = sbr.rel (0) target = $region33
  $region32: #{tpu_custom_call.1} parent=0 // pred_region
    _
  $region33: #{tpu_custom_call.1} parent=0 // pred_fallthru
    _
  // Predicated region
  $region34: #{tpu_custom_call.1} parent=0 // pred_check
    _
  $region35: #{tpu_custom_call.1} parent=0 // pred_check_branch
    %316 = sbr.rel (0) target = $region37
  $region36: #{tpu_custom_call.1} parent=0 // pred_region
    _
  $region37: #{tpu_custom_call.1} parent=0 // pred_fallthru
    _

</llo_original>
